<compile_context>
chip_gen: v5e
topology: v5e:2x2
jax: 0.10.0
libtpu: 0.0.40
codegen_flags: <defaults>
</compile_context>

<pallas_src>
import functools

import jax
import jax.numpy as jnp
from jax.experimental import pallas as pl
from jax.experimental.pallas import tpu as pltpu


def _round_up(x, m):
    return ((x + m - 1) // m) * m


# ---------------------------------------------------------------------------
# Fused Pallas kernel: whole 1x1-conv stack, channels-in-sublanes layout.
#   x_ref : (1, Cin, tm) f32        o_ref : (1, 1, tm) f32
#   w1    : (c1, Cin) bf16          b1    : (c1, 1) f32
#   w2    : (c2, c1) bf16           s2,t2 : (c2, 1) f32  (folded BatchNorm)
#   w3    : (1, c2)  bf16
# ---------------------------------------------------------------------------
def _pixel_disc_kernel(x_ref, w1_ref, b1_ref, w2_ref, s2_ref, t2_ref, w3_ref,
                       o_ref, *, slope):
    # In-kernel f32 -> bf16 cast (free on the VPU slot, hides under MXU work).
    x = x_ref[0].astype(jnp.bfloat16)                                # (Cin, tm)

    # conv1 (1x1) + bias + LeakyReLU.  K=Cin is tiny; the MXU pass is cheap and
    # off the steady-state critical path (a VPU 3-FMA alternative was
    # considered per review item 8 but the MXU dot keeps the code simple).
    h = jnp.dot(w1_ref[...], x, preferred_element_type=jnp.float32)  # (c1, tm)
    h = h + b1_ref[...]                                              # lane bcast
    h = jnp.where(h >= 0, h, slope * h).astype(jnp.bfloat16)

    # conv2 (1x1, no bias) + folded eval-mode BatchNorm + LeakyReLU.
    h = jnp.dot(w2_ref[...], h, preferred_element_type=jnp.float32)  # (c2, tm)
    h = h * s2_ref[...] + t2_ref[...]
    h = jnp.where(h >= 0, h, slope * h).astype(jnp.bfloat16)

    # conv3 (1x1, no bias, no activation) -> lane-dense (1, tm) row.
    out = jnp.dot(w3_ref[...], h, preferred_element_type=jnp.float32)
    o_ref[0] = out.astype(o_ref.dtype)


def pixel_disc_pallas(x3, prepped, *, slope=0.2):
    """x3: (N, Cin, HW) f32 (free view of NCHW).  Returns (N, 1, HWp) f32."""
    w1, b1, w2, s2, t2, w3 = prepped
    n, cin, hw = x3.shape
    c1 = w1.shape[0]
    c2 = w2.shape[0]

    # Pixel-tile size: prefer 512-1024 (per-step overhead amortization) but
    # shrink until the grid has >= ~8 blocks so both v7x TensorCores get
    # multiple pipelined steps.  Floor of 128 keeps stores lane-dense.
    tm = 1024
    while tm > 128 and n * pl.cdiv(hw, tm) < 8:
        tm //= 2
    hwp = _round_up(hw, tm)
    if hwp != hw:
        x3 = jnp.pad(x3, ((0, 0), (0, 0), (0, hwp - hw)))

    grid = (n, hwp // tm)

    flops = int(2 * n * hwp * (cin * c1 + c1 * c2 + c2 * 1))
    bytes_accessed = int(
        n * cin * hwp * 4                      # input (f32, cast in-kernel)
        + n * hwp * 4                          # output (narrow, 4 B/pixel)
        + (w1.size + w2.size + w3.size) * 2    # bf16 weights (resident)
        + (b1.size + s2.size + t2.size) * 4)   # f32 bias / folded BN

    out = pl.pallas_call(
        functools.partial(_pixel_disc_kernel, slope=slope),
        out_shape=jax.ShapeDtypeStruct((n, 1, hwp), jnp.float32),
        grid=grid,
        in_specs=[
            pl.BlockSpec((1, cin, tm), lambda b, i: (b, 0, i)),  # pixel tile
            pl.BlockSpec((c1, cin), lambda b, i: (0, 0)),        # W1 (resident)
            pl.BlockSpec((c1, 1), lambda b, i: (0, 0)),          # b1 column
            pl.BlockSpec((c2, c1), lambda b, i: (0, 0)),         # W2 (resident)
            pl.BlockSpec((c2, 1), lambda b, i: (0, 0)),          # BN scale col
            pl.BlockSpec((c2, 1), lambda b, i: (0, 0)),          # BN shift col
            pl.BlockSpec((1, c2), lambda b, i: (0, 0)),          # W3 (resident)
        ],
        out_specs=pl.BlockSpec((1, 1, tm), lambda b, i: (b, 0, i)),
        compiler_params=pltpu.CompilerParams(
            dimension_semantics=("parallel", "parallel")),
        cost_estimate=pl.CostEstimate(flops=flops, transcendentals=0,
                                      bytes_accessed=bytes_accessed),
    )(x3, w1, b1, w2, s2, t2, w3)
    return out


# ---------------------------------------------------------------------------
# Parameter init (PyTorch-style conv init) and one-time kernel-ready prep.
# ---------------------------------------------------------------------------
def init_params(key, input_nc=3, ndf=64):
    c1, c2 = ndf, ndf * 2
    ks = jax.random.split(key, 8)

    def conv_w(k, cout, cin):
        bound = 1.0 / jnp.sqrt(cin)          # 1x1 conv: fan_in = cin
        return jax.random.uniform(k, (cout, cin, 1, 1), jnp.float32,
                                  -bound, bound)

    w1 = conv_w(ks[0], c1, input_nc)
    b1 = jax.random.uniform(ks[1], (c1,), jnp.float32,
                            -1.0 / jnp.sqrt(input_nc),
                            1.0 / jnp.sqrt(input_nc))
    w2 = conv_w(ks[2], c2, c1)               # bias=False
    # BatchNorm2d(c2) affine + running stats (non-trivial so the folded
    # scale/shift path is actually exercised; a fresh PyTorch module would
    # have gamma=1, beta=0, mean=0, var=1).
    gamma = jax.random.uniform(ks[3], (c2,), jnp.float32, 0.8, 1.2)
    beta = jax.random.uniform(ks[4], (c2,), jnp.float32, -0.1, 0.1)
    rmean = 0.1 * jax.random.normal(ks[5], (c2,), jnp.float32)
    rvar = jax.random.uniform(ks[6], (c2,), jnp.float32, 0.5, 1.5)
    w3 = conv_w(ks[7], 1, c2)                # bias=False
    return dict(w1=w1, b1=b1, w2=w2, gamma=gamma, beta=beta,
                rmean=rmean, rvar=rvar, w3=w3)


def prepare_params(p, eps=1e-5):
    """One-time transform to kernel layout: weights keep their native
    (Cout, Cin) orientation (bf16); BatchNorm is folded into per-channel f32
    scale/shift column vectors; no padding or transposes needed."""
    w1 = p["w1"][:, :, 0, 0].astype(jnp.bfloat16)            # (c1, cin)
    b1 = p["b1"].reshape(-1, 1).astype(jnp.float32)          # (c1, 1)
    w2 = p["w2"][:, :, 0, 0].astype(jnp.bfloat16)            # (c2, c1)
    scale = p["gamma"] / jnp.sqrt(p["rvar"] + eps)
    shift = p["beta"] - p["rmean"] * scale
    s2 = scale.reshape(-1, 1).astype(jnp.float32)            # (c2, 1)
    t2 = shift.reshape(-1, 1).astype(jnp.float32)            # (c2, 1)
    w3 = p["w3"][:, :, 0, 0].astype(jnp.bfloat16)            # (1, c2)
    return tuple(jax.device_put(a) for a in (w1, b1, w2, s2, t2, w3))


# ---------------------------------------------------------------------------
# Forward pass (matches PixelDiscriminator.forward, eval-mode BN).
# ---------------------------------------------------------------------------
@jax.jit
def pixel_discriminator_forward(x_nchw, prepped):
    n, c, h, w = x_nchw.shape
    hw = h * w
    x3 = x_nchw.reshape(n, c, hw)              # free view of NCHW
    y = pixel_disc_pallas(x3, prepped)         # (n, 1, hwp)
    return y[:, :, :hw].reshape(n, 1, h, w)    # no-op slice when hwp == hw


# Pure-JAX reference (mirrors the kernel's bf16 operand rounding).
def reference_forward(x_nchw, p, eps=1e-5, slope=0.2):
    f32 = lambda a: a.astype(jnp.bfloat16).astype(jnp.float32)
    x = jnp.transpose(x_nchw, (0, 2, 3, 1))
    h = jnp.einsum("nhwc,dc->nhwd", f32(x), f32(p["w1"][:, :, 0, 0])) + p["b1"]
    h = jnp.where(h >= 0, h, slope * h)
    h = jnp.einsum("nhwc,dc->nhwd", f32(h), f32(p["w2"][:, :, 0, 0]))
    h = (h - p["rmean"]) / jnp.sqrt(p["rvar"] + eps) * p["gamma"] + p["beta"]
    h = jnp.where(h >= 0, h, slope * h)
    h = jnp.einsum("nhwc,dc->nhwd", f32(h), f32(p["w3"][:, :, 0, 0]))
    return jnp.transpose(h, (0, 3, 1, 2))


if __name__ == "__main__":
    root = jax.random.PRNGKey(0)
    k_params, k_x = jax.random.split(root)

    params = init_params(k_params, input_nc=3, ndf=64)
    prepped = prepare_params(params)

    x = jax.random.normal(k_x, (2, 3, 16, 16), jnp.float32)

    out = pixel_discriminator_forward(x, prepped)
    out = jax.block_until_ready(out)
    assert out.shape == (2, 1, 16, 16), out.shape
    assert bool(jnp.all(jnp.isfinite(out)))

    ref = reference_forward(x, params)
    max_err = float(jnp.max(jnp.abs(out - ref)))
    assert bool(jnp.allclose(out, ref, atol=2e-2, rtol=2e-2)), max_err

    print("KERNEL_OK")
</pallas_src>

<mosaic_0001>
module attributes {stable_mosaic.version = 11 : i64} {
  func.func @_pixel_disc_kernel(%arg0: i32, %arg1: i32, %arg2: memref<1x3x128xf32, #tpu.memory_space<vmem>>, %arg3: memref<64x3xbf16, #tpu.memory_space<vmem>>, %arg4: memref<64x1xf32, #tpu.memory_space<vmem>>, %arg5: memref<128x64xbf16, #tpu.memory_space<vmem>>, %arg6: memref<128x1xf32, #tpu.memory_space<vmem>>, %arg7: memref<128x1xf32, #tpu.memory_space<vmem>>, %arg8: memref<1x128xbf16, #tpu.memory_space<vmem>>, %arg9: memref<1x1x128xf32, #tpu.memory_space<vmem>>) attributes {dimension_semantics = [#tpu.dimension_semantics<parallel>, #tpu.dimension_semantics<parallel>], iteration_bounds = array<i64: 2, 2>, scalar_prefetch = 0 : i64, scratch_operands = 0 : i64, tpu.core_type = #tpu.core_type<tc>, window_params = [{transform_indices = @transform_0, window_bounds = array<i64: 1, 3, 128>}, {pipeline_mode = #tpu.pipeline_mode<synchronous>, transform_indices = @transform_1, window_bounds = array<i64: 64, 3>}, {pipeline_mode = #tpu.pipeline_mode<synchronous>, transform_indices = @transform_2, window_bounds = array<i64: 64, 1>}, {pipeline_mode = #tpu.pipeline_mode<synchronous>, transform_indices = @transform_3, window_bounds = array<i64: 128, 64>}, {pipeline_mode = #tpu.pipeline_mode<synchronous>, transform_indices = @transform_4, window_bounds = array<i64: 128, 1>}, {pipeline_mode = #tpu.pipeline_mode<synchronous>, transform_indices = @transform_5, window_bounds = array<i64: 128, 1>}, {pipeline_mode = #tpu.pipeline_mode<synchronous>, transform_indices = @transform_6, window_bounds = array<i64: 1, 128>}, {transform_indices = @transform_7, window_bounds = array<i64: 1, 1, 128>}]} {
    %c0 = arith.constant 0 : index
    %c0_0 = arith.constant 0 : index
    %c0_1 = arith.constant 0 : index
    %0 = vector.load %arg2[%c0, %c0_0, %c0_1] : memref<1x3x128xf32, #tpu.memory_space<vmem>>, vector<1x3x128xf32>
    %1 = vector.shape_cast %0 : vector<1x3x128xf32> to vector<3x128xf32>
    %2 = arith.truncf %1 : vector<3x128xf32> to vector<3x128xbf16>
    %c0_2 = arith.constant 0 : index
    %c0_3 = arith.constant 0 : index
    %3 = vector.load %arg3[%c0_2, %c0_3] : memref<64x3xbf16, #tpu.memory_space<vmem>>, vector<64x3xbf16>
    %cst = arith.constant dense<0.000000e+00> : vector<64x128xf32>
    %4 = tpu.matmul %3, %2, %cst {dimension_numbers = #tpu.dot_dimension_numbers<[1], [0], [0], [1], [0, 0, 1, 1], [], []>} : vector<64x3xbf16>, vector<3x128xbf16>, vector<64x128xf32> -> vector<64x128xf32>
    %c0_4 = arith.constant 0 : index
    %c0_5 = arith.constant 0 : index
    %5 = vector.load %arg4[%c0_4, %c0_5] : memref<64x1xf32, #tpu.memory_space<vmem>>, vector<64x1xf32>
    %6 = vector.broadcast %5 : vector<64x1xf32> to vector<64x128xf32>
    %7 = arith.addf %4, %6 : vector<64x128xf32>
    %cst_6 = arith.constant 0.000000e+00 : f32
    %8 = vector.broadcast %cst_6 : f32 to vector<64x128xf32>
    %9 = arith.cmpf oge, %7, %8 : vector<64x128xf32>
    %cst_7 = arith.constant 2.000000e-01 : f32
    %10 = vector.broadcast %cst_7 : f32 to vector<64x128xf32>
    %11 = arith.mulf %10, %7 : vector<64x128xf32>
    %12 = arith.select %9, %7, %11 : vector<64x128xi1>, vector<64x128xf32>
    %13 = arith.truncf %12 : vector<64x128xf32> to vector<64x128xbf16>
    %c0_8 = arith.constant 0 : index
    %c0_9 = arith.constant 0 : index
    %14 = vector.load %arg5[%c0_8, %c0_9] : memref<128x64xbf16, #tpu.memory_space<vmem>>, vector<128x64xbf16>
    %cst_10 = arith.constant dense<0.000000e+00> : vector<128x128xf32>
    %15 = tpu.matmul %14, %13, %cst_10 {dimension_numbers = #tpu.dot_dimension_numbers<[1], [0], [0], [1], [0, 0, 1, 1], [], []>} : vector<128x64xbf16>, vector<64x128xbf16>, vector<128x128xf32> -> vector<128x128xf32>
    %c0_11 = arith.constant 0 : index
    %c0_12 = arith.constant 0 : index
    %16 = vector.load %arg6[%c0_11, %c0_12] : memref<128x1xf32, #tpu.memory_space<vmem>>, vector<128x1xf32>
    %17 = vector.broadcast %16 : vector<128x1xf32> to vector<128x128xf32>
    %18 = arith.mulf %15, %17 : vector<128x128xf32>
    %c0_13 = arith.constant 0 : index
    %c0_14 = arith.constant 0 : index
    %19 = vector.load %arg7[%c0_13, %c0_14] : memref<128x1xf32, #tpu.memory_space<vmem>>, vector<128x1xf32>
    %20 = vector.broadcast %19 : vector<128x1xf32> to vector<128x128xf32>
    %21 = arith.addf %18, %20 : vector<128x128xf32>
    %cst_15 = arith.constant 0.000000e+00 : f32
    %22 = vector.broadcast %cst_15 : f32 to vector<128x128xf32>
    %23 = arith.cmpf oge, %21, %22 : vector<128x128xf32>
    %cst_16 = arith.constant 2.000000e-01 : f32
    %24 = vector.broadcast %cst_16 : f32 to vector<128x128xf32>
    %25 = arith.mulf %24, %21 : vector<128x128xf32>
    %26 = arith.select %23, %21, %25 : vector<128x128xi1>, vector<128x128xf32>
    %27 = arith.truncf %26 : vector<128x128xf32> to vector<128x128xbf16>
    %c0_17 = arith.constant 0 : index
    %c0_18 = arith.constant 0 : index
    %28 = vector.load %arg8[%c0_17, %c0_18] : memref<1x128xbf16, #tpu.memory_space<vmem>>, vector<1x128xbf16>
    %cst_19 = arith.constant dense<0.000000e+00> : vector<1x128xf32>
    %29 = tpu.matmul %28, %27, %cst_19 {dimension_numbers = #tpu.dot_dimension_numbers<[1], [0], [0], [1], [0, 0, 1, 1], [], []>} : vector<1x128xbf16>, vector<128x128xbf16>, vector<1x128xf32> -> vector<1x128xf32>
    %c0_20 = arith.constant 0 : index
    %c0_21 = arith.constant 0 : index
    %c0_22 = arith.constant 0 : index
    %30 = vector.load %arg9[%c0_20, %c0_21, %c0_22] : memref<1x1x128xf32, #tpu.memory_space<vmem>>, vector<1x1x128xf32>
    %31 = vector.shape_cast %30 : vector<1x1x128xf32> to vector<1x128xf32>
    %32 = vector.shape_cast %29 : vector<1x128xf32> to vector<1x1x128xf32>
    tpu.vector_store %arg9[%c0_20, %c0_21, %c0_22], %32 {strides = array<i32>} : memref<1x1x128xf32, #tpu.memory_space<vmem>>, vector<1x1x128xf32>,
    return
  }
  func.func @transform_0(%arg0: i32, %arg1: i32) -> (i32, i32, i32) {
    %c0_i32 = arith.constant 0 : i32
    %c0_i32_0 = arith.constant 0 : i32
    return %arg0, %c0_i32, %arg1 : i32, i32, i32
  }
  func.func @transform_1(%arg0: i32, %arg1: i32) -> (i32, i32) {
    %c0_i32 = arith.constant 0 : i32
    %c0_i32_0 = arith.constant 0 : i32
    %c0_i32_1 = arith.constant 0 : i32
    return %c0_i32, %c0_i32_0 : i32, i32
  }
  func.func @transform_2(%arg0: i32, %arg1: i32) -> (i32, i32) {
    %c0_i32 = arith.constant 0 : i32
    %c0_i32_0 = arith.constant 0 : i32
    %c0_i32_1 = arith.constant 0 : i32
    return %c0_i32, %c0_i32_0 : i32, i32
  }
  func.func @transform_3(%arg0: i32, %arg1: i32) -> (i32, i32) {
    %c0_i32 = arith.constant 0 : i32
    %c0_i32_0 = arith.constant 0 : i32
    %c0_i32_1 = arith.constant 0 : i32
    return %c0_i32, %c0_i32_0 : i32, i32
  }
  func.func @transform_4(%arg0: i32, %arg1: i32) -> (i32, i32) {
    %c0_i32 = arith.constant 0 : i32
    %c0_i32_0 = arith.constant 0 : i32
    %c0_i32_1 = arith.constant 0 : i32
    return %c0_i32, %c0_i32_0 : i32, i32
  }
  func.func @transform_5(%arg0: i32, %arg1: i32) -> (i32, i32) {
    %c0_i32 = arith.constant 0 : i32
    %c0_i32_0 = arith.constant 0 : i32
    %c0_i32_1 = arith.constant 0 : i32
    return %c0_i32, %c0_i32_0 : i32, i32
  }
  func.func @transform_6(%arg0: i32, %arg1: i32) -> (i32, i32) {
    %c0_i32 = arith.constant 0 : i32
    %c0_i32_0 = arith.constant 0 : i32
    %c0_i32_1 = arith.constant 0 : i32
    return %c0_i32, %c0_i32_0 : i32, i32
  }
  func.func @transform_7(%arg0: i32, %arg1: i32) -> (i32, i32, i32) {
    %c0_i32 = arith.constant 0 : i32
    %c0_i32_0 = arith.constant 0 : i32
    return %arg0, %c0_i32, %arg1 : i32, i32, i32
  }
}

</mosaic_0001>

<llo_original>
// kernel: pixel_discriminator_forward.1
$region0: #{pixel_discriminator_forward.1}
  #allocation0 [shape = 'u32[]', space=smem, size = 0x4, offset = 0x4, fixed_abs, tag = 'smem constant byte address 0x4 - core index']
  #allocation1 [shape = 'u32[72,128]{1,0:T(1,128)}', space=vmem, size = 0x9000, scoped, tag = 'internal scratch']
  %s0 = inlined_call_operand.vmem [shape: f32[2,3,256], index: 0, kind: input, shape index: {}]
  %s1 = inlined_call_operand.vmem [shape: bf16[64,3], index: 1, kind: input, shape index: {}]
  %s2 = inlined_call_operand.vmem [shape: f32[64,1], index: 2, kind: input, shape index: {}]
  %s3 = inlined_call_operand.vmem [shape: bf16[128,64], index: 3, kind: input, shape index: {}]
  %s4 = inlined_call_operand.vmem [shape: f32[128,1], index: 4, kind: input, shape index: {}]
  %s5 = inlined_call_operand.vmem [shape: f32[128,1], index: 5, kind: input, shape index: {}]
  %s6 = inlined_call_operand.vmem [shape: bf16[1,128], index: 6, kind: input, shape index: {}]
  %s7 = inlined_call_operand.vmem [shape: f32[2,1,256], index: 7, kind: output, shape index: {}]
  %s8 = sld [smem:[#allocation0]]
  $region61: #{pixel_discriminator_forward.1} parent=0
    _
  %s10 = ssub.s32 1, %s8
  %s11 = scalar_select 0, %s10, %s8
  loop: start=0, step=1, limit=6
  $region2: #{pixel_discriminator_forward.1} parent=0 // loop_pre_header
    _
  $region3: #{pixel_discriminator_forward.1} parent=0 // loop_header
    %s13 = sphi 0, %s17
    %p14 = scmp.ge.s32.totalorder %s13, 6
    %s20 = sphi 0, %s32
    %s21 = sphi 0, %s28
    %s22 = sphi 0, %s20
    %s23 = sphi 0, %s21
    %s24 = sphi 0, %s22
    %s25 = sphi 0, %s23
    %s37 = sphi 0, %s39
    %s40 = sphi 0, %s37
    %s41 = sphi 0, %s40
    %s57 = sphi 0, %s41
    %s61 = sphi 0, %s61
    %s63 = sphi 0, %s61
    %s64 = sphi 0, %s63
    %s78 = sphi 0, %s64
    %s82 = sphi 0, %s82
    %s84 = sphi 0, %s82
    %s85 = sphi 0, %s84
    %s99 = sphi 0, %s85
    %s103 = sphi 0, %s103
    %s105 = sphi 0, %s103
    %s106 = sphi 0, %s105
    %s120 = sphi 0, %s106
    %s124 = sphi 0, %s124
    %s126 = sphi 0, %s124
    %s127 = sphi 0, %s126
    %s141 = sphi 0, %s127
    %s145 = sphi 0, %s145
    %s147 = sphi 0, %s145
    %s148 = sphi 0, %s147
    %s162 = sphi 0, %s148
    %s166 = sphi 0, %s166
    %s168 = sphi 0, %s166
    %s169 = sphi 0, %s168
    %s183 = sphi 0, %s169
    %s191 = sphi 0, %s193
    %s194 = sphi 0, %s191
    %s195 = sphi 0, %s194
    %s211 = sphi 0, %s195
  $region4: #{pixel_discriminator_forward.1} parent=0 // loop_header_branch
    %16 = sbr.rel (%p14) target = $region8
  $region5: #{pixel_discriminator_forward.1} parent=0 // loop_body
    %s18 = ssub.s32 %s13, 1
    %s19 = ssub.s32 %s13, 2
    %s26 = sadd.s32 1, %s21
    %p27 = scmp.ge.s32.totalorder %s26, 2
    %s28 = scalar_select %p27, 0, %s26
    %s29 = sadd.s32 1, %s20
    %s30 = scalar_select %p27, %s29, %s20
    %p31 = scmp.ge.s32.totalorder %s30, 2
    %s32 = scalar_select %p31, 0, %s30
    %s33 = ssub.s32 %s20, %s32
    %s34 = ssub.s32 %s21, %s28
    %s35 = sor.u32 %s33, %s34
    %p36 = scmp.eq.s32.totalorder %s35, 0
    %s38 = sadd.s32 %s37, 1
    %s39 = scalar_select %p36, %s37, %s38
    %p42 = pneg %p36
    %p43 = scmp.eq.s32.totalorder %s13, 3
    %p44 = por %p42, %p43
    %p45 = scmp.ne.s32.totalorder %s37, %s40
    %p46 = scmp.eq.s32.totalorder %s13, 0
    %p47 = por %p45, %p46
    %p48 = scmp.ne.s32.totalorder %s37, %s40
    %p49 = scmp.eq.s32.totalorder %s18, 3
    %p50 = por %p48, %p49
    %p51 = scmp.ne.s32.totalorder %s40, %s41
    %p52 = scmp.eq.s32.totalorder %s18, 0
    %p53 = por %p51, %p52
    %p54 = scmp.ne.s32.totalorder %s40, %s41
    %p55 = scmp.eq.s32.totalorder %s19, 3
    %p56 = por %p54, %p55
    %p58 = scmp.ne.s32.totalorder %s41, %s57
    %p59 = scmp.eq.s32.totalorder %s19, 0
    %p60 = por %p58, %p59
    %s62 = sadd.s32 %s61, 1
    %p65 = scmp.eq.s32.totalorder %s13, 3
    %p66 = scmp.ne.s32.totalorder %s61, %s63
    %p67 = scmp.eq.s32.totalorder %s13, 0
    %p68 = por %p66, %p67
    %p69 = scmp.ne.s32.totalorder %s61, %s63
    %p70 = scmp.eq.s32.totalorder %s18, 3
    %p71 = por %p69, %p70
    %p72 = scmp.ne.s32.totalorder %s63, %s64
    %p73 = scmp.eq.s32.totalorder %s18, 0
    %p74 = por %p72, %p73
    %p75 = scmp.ne.s32.totalorder %s63, %s64
    %p76 = scmp.eq.s32.totalorder %s19, 3
    %p77 = por %p75, %p76
    %p79 = scmp.ne.s32.totalorder %s64, %s78
    %p80 = scmp.eq.s32.totalorder %s19, 0
    %p81 = por %p79, %p80
    %s83 = sadd.s32 %s82, 1
    %p86 = scmp.eq.s32.totalorder %s13, 3
    %p87 = scmp.ne.s32.totalorder %s82, %s84
    %p88 = scmp.eq.s32.totalorder %s13, 0
    %p89 = por %p87, %p88
    %p90 = scmp.ne.s32.totalorder %s82, %s84
    %p91 = scmp.eq.s32.totalorder %s18, 3
    %p92 = por %p90, %p91
    %p93 = scmp.ne.s32.totalorder %s84, %s85
    %p94 = scmp.eq.s32.totalorder %s18, 0
    %p95 = por %p93, %p94
    %p96 = scmp.ne.s32.totalorder %s84, %s85
    %p97 = scmp.eq.s32.totalorder %s19, 3
    %p98 = por %p96, %p97
    %p100 = scmp.ne.s32.totalorder %s85, %s99
    %p101 = scmp.eq.s32.totalorder %s19, 0
    %p102 = por %p100, %p101
    %s104 = sadd.s32 %s103, 1
    %p107 = scmp.eq.s32.totalorder %s13, 3
    %p108 = scmp.ne.s32.totalorder %s103, %s105
    %p109 = scmp.eq.s32.totalorder %s13, 0
    %p110 = por %p108, %p109
    %p111 = scmp.ne.s32.totalorder %s103, %s105
    %p112 = scmp.eq.s32.totalorder %s18, 3
    %p113 = por %p111, %p112
    %p114 = scmp.ne.s32.totalorder %s105, %s106
    %p115 = scmp.eq.s32.totalorder %s18, 0
    %p116 = por %p114, %p115
    %p117 = scmp.ne.s32.totalorder %s105, %s106
    %p118 = scmp.eq.s32.totalorder %s19, 3
    %p119 = por %p117, %p118
    %p121 = scmp.ne.s32.totalorder %s106, %s120
    %p122 = scmp.eq.s32.totalorder %s19, 0
    %p123 = por %p121, %p122
    %s125 = sadd.s32 %s124, 1
    %p128 = scmp.eq.s32.totalorder %s13, 3
    %p129 = scmp.ne.s32.totalorder %s124, %s126
    %p130 = scmp.eq.s32.totalorder %s13, 0
    %p131 = por %p129, %p130
    %p132 = scmp.ne.s32.totalorder %s124, %s126
    %p133 = scmp.eq.s32.totalorder %s18, 3
    %p134 = por %p132, %p133
    %p135 = scmp.ne.s32.totalorder %s126, %s127
    %p136 = scmp.eq.s32.totalorder %s18, 0
    %p137 = por %p135, %p136
    %p138 = scmp.ne.s32.totalorder %s126, %s127
    %p139 = scmp.eq.s32.totalorder %s19, 3
    %p140 = por %p138, %p139
    %p142 = scmp.ne.s32.totalorder %s127, %s141
    %p143 = scmp.eq.s32.totalorder %s19, 0
    %p144 = por %p142, %p143
    %s146 = sadd.s32 %s145, 1
    %p149 = scmp.eq.s32.totalorder %s13, 3
    %p150 = scmp.ne.s32.totalorder %s145, %s147
    %p151 = scmp.eq.s32.totalorder %s13, 0
    %p152 = por %p150, %p151
    %p153 = scmp.ne.s32.totalorder %s145, %s147
    %p154 = scmp.eq.s32.totalorder %s18, 3
    %p155 = por %p153, %p154
    %p156 = scmp.ne.s32.totalorder %s147, %s148
    %p157 = scmp.eq.s32.totalorder %s18, 0
    %p158 = por %p156, %p157
    %p159 = scmp.ne.s32.totalorder %s147, %s148
    %p160 = scmp.eq.s32.totalorder %s19, 3
    %p161 = por %p159, %p160
    %p163 = scmp.ne.s32.totalorder %s148, %s162
    %p164 = scmp.eq.s32.totalorder %s19, 0
    %p165 = por %p163, %p164
    %s167 = sadd.s32 %s166, 1
    %p170 = scmp.eq.s32.totalorder %s13, 3
    %p171 = scmp.ne.s32.totalorder %s166, %s168
    %p172 = scmp.eq.s32.totalorder %s13, 0
    %p173 = por %p171, %p172
    %p174 = scmp.ne.s32.totalorder %s166, %s168
    %p175 = scmp.eq.s32.totalorder %s18, 3
    %p176 = por %p174, %p175
    %p177 = scmp.ne.s32.totalorder %s168, %s169
    %p178 = scmp.eq.s32.totalorder %s18, 0
    %p179 = por %p177, %p178
    %p180 = scmp.ne.s32.totalorder %s168, %s169
    %p181 = scmp.eq.s32.totalorder %s19, 3
    %p182 = por %p180, %p181
    %p184 = scmp.ne.s32.totalorder %s169, %s183
    %p185 = scmp.eq.s32.totalorder %s19, 0
    %p186 = por %p184, %p185
    %s187 = ssub.s32 %s20, %s32
    %s188 = ssub.s32 %s21, %s28
    %s189 = sor.u32 %s187, %s188
    %p190 = scmp.eq.s32.totalorder %s189, 0
    %s192 = sadd.s32 %s191, 1
    %s193 = scalar_select %p190, %s191, %s192
    %p196 = pneg %p190
    %p197 = scmp.eq.s32.totalorder %s13, 3
    %p198 = por %p196, %p197
    %p199 = scmp.ne.s32.totalorder %s191, %s194
    %p200 = scmp.eq.s32.totalorder %s13, 0
    %p201 = por %p199, %p200
    %p202 = scmp.ne.s32.totalorder %s191, %s194
    %p203 = scmp.eq.s32.totalorder %s18, 3
    %p204 = por %p202, %p203
    %p205 = scmp.ne.s32.totalorder %s194, %s195
    %p206 = scmp.eq.s32.totalorder %s18, 0
    %p207 = por %p205, %p206
    %p208 = scmp.ne.s32.totalorder %s194, %s195
    %p209 = scmp.eq.s32.totalorder %s19, 3
    %p210 = por %p208, %p209
    %p212 = scmp.ne.s32.totalorder %s195, %s211
    %p213 = scmp.eq.s32.totalorder %s19, 0
    %p214 = por %p212, %p213
    %p215 = scmp.le.s32.totalorder 1, %s13
    %p216 = scmp.lt.s32.totalorder %s13, 5
    %p217 = pnand %p215, %p216
    %p218 = pneg %p217
    // Predicated region
    $region9: #{pixel_discriminator_forward.1} parent=5 // pred_check
      _
    $region10: #{pixel_discriminator_forward.1} parent=5 // pred_check_branch
      %220 = sbr.rel (%p217) target = $region12
    $region11: #{pixel_discriminator_forward.1} parent=5 // pred_region
      %s221 = ssub.s32 %s13, 1
      // Predicated region
      $region13: #{pixel_discriminator_forward.1} parent=11 // pred_check
        %p222 = pneg %p74
      $region14: #{pixel_discriminator_forward.1} parent=11 // pred_check_branch
        %224 = sbr.rel (%p222) target = $region16
      $region15: #{pixel_discriminator_forward.1} parent=11 // pred_region
        _
      $region16: #{pixel_discriminator_forward.1} parent=11 // pred_fallthru
        _
      // Predicated region
      $region17: #{pixel_discriminator_forward.1} parent=11 // pred_check
        %p225 = pneg %p95
      $region18: #{pixel_discriminator_forward.1} parent=11 // pred_check_branch
        %227 = sbr.rel (%p225) target = $region20
      $region19: #{pixel_discriminator_forward.1} parent=11 // pred_region
        _
      $region20: #{pixel_discriminator_forward.1} parent=11 // pred_fallthru
        _
      // Predicated region
      $region21: #{pixel_discriminator_forward.1} parent=11 // pred_check
        %p228 = pneg %p116
      $region22: #{pixel_discriminator_forward.1} parent=11 // pred_check_branch
        %230 = sbr.rel (%p228) target = $region24
      $region23: #{pixel_discriminator_forward.1} parent=11 // pred_region
        _
      $region24: #{pixel_discriminator_forward.1} parent=11 // pred_fallthru
        _
      // Predicated region
      $region25: #{pixel_discriminator_forward.1} parent=11 // pred_check
        %p231 = pneg %p137
      $region26: #{pixel_discriminator_forward.1} parent=11 // pred_check_branch
        %233 = sbr.rel (%p231) target = $region28
      $region27: #{pixel_discriminator_forward.1} parent=11 // pred_region
        _
      $region28: #{pixel_discriminator_forward.1} parent=11 // pred_fallthru
        _
      // Predicated region
      $region29: #{pixel_discriminator_forward.1} parent=11 // pred_check
        %p234 = pneg %p158
      $region30: #{pixel_discriminator_forward.1} parent=11 // pred_check_branch
        %236 = sbr.rel (%p234) target = $region32
      $region31: #{pixel_discriminator_forward.1} parent=11 // pred_region
        _
      $region32: #{pixel_discriminator_forward.1} parent=11 // pred_fallthru
        _
      // Predicated region
      $region33: #{pixel_discriminator_forward.1} parent=11 // pred_check
        %p237 = pneg %p179
      $region34: #{pixel_discriminator_forward.1} parent=11 // pred_check_branch
        %239 = sbr.rel (%p237) target = $region36
      $region35: #{pixel_discriminator_forward.1} parent=11 // pred_region
        _
      $region36: #{pixel_discriminator_forward.1} parent=11 // pred_fallthru
        _
    $region12: #{pixel_discriminator_forward.1} parent=5 // pred_fallthru
      _
    %p240 = scmp.lt.s32.totalorder %s13, 4
    // Predicated region
    $region37: #{pixel_discriminator_forward.1} parent=5 // pred_check
      %p241 = pneg %p240
    $region38: #{pixel_discriminator_forward.1} parent=5 // pred_check_branch
      %243 = sbr.rel (%p241) target = $region40
    $region39: #{pixel_discriminator_forward.1} parent=5 // pred_region
      // Predicated region
      $region41: #{pixel_discriminator_forward.1} parent=39 // pred_check
        %p244 = pneg %p47
      $region42: #{pixel_discriminator_forward.1} parent=39 // pred_check_branch
        %246 = sbr.rel (%p244) target = $region44
      $region43: #{pixel_discriminator_forward.1} parent=39 // pred_region
        %p247 = scmp.lt.s32.totalorder %s20, 1
        %s248 = scalar_select %p247, %s20, 1
        %p249 = scmp.lt.s32.totalorder %s21, 1
        %s250 = scalar_select %p249, %s21, 1
        %s251 = smul.addr %s248, 2
        %s252 = sadd.s32 %s250, %s251
        %s253 = smul.addr %s252, 4
        %s254 = scalar_lea.vmem %s0, %s253
      $region44: #{pixel_discriminator_forward.1} parent=39 // pred_fallthru
        _
    $region40: #{pixel_discriminator_forward.1} parent=5 // pred_fallthru
      _
    %p255 = scmp.le.s32.totalorder 1, %s13
    %p256 = scmp.lt.s32.totalorder %s13, 5
    %p257 = pnand %p255, %p256
    %p258 = pneg %p257
    // Predicated region
    $region45: #{pixel_discriminator_forward.1} parent=5 // pred_check
      _
    $region46: #{pixel_discriminator_forward.1} parent=5 // pred_check_branch
      %260 = sbr.rel (%p257) target = $region48
    $region47: #{pixel_discriminator_forward.1} parent=5 // pred_region
      %s261 = ssub.s32 %s13, 1
      %p262 = scmp.lt.s32.totalorder %s22, 1
      %s263 = scalar_select %p262, %s22, 1
      %p264 = scmp.lt.s32.totalorder %s23, 1
      %s265 = scalar_select %p264, %s23, 1
      %s266 = smul.addr %s263, 2
      %s267 = sadd.s32 %s265, %s266
      %s268 = smul.addr %s267, 4
      %s269 = scalar_lea.vmem %s0, %s268
      %p270 = pneg %p53
      %p271 = pneg %p50
      %p272 = pneg %p74
      %p273 = pneg %p71
      %p274 = pneg %p95
      %p275 = pneg %p92
      %p276 = pneg %p116
      %p277 = pneg %p113
      %p278 = pneg %p137
      %p279 = pneg %p134
      %p280 = pneg %p158
      %p281 = pneg %p155
      %p282 = pneg %p179
      %p283 = pneg %p176
      %p284 = pneg %p207
      %p285 = pneg %p204
      %p286 = scmp.lt.s32.totalorder %s22, 1
      %s287 = scalar_select %p286, %s22, 1
      %p288 = scmp.lt.s32.totalorder %s23, 1
      %s289 = scalar_select %p288, %s23, 1
      %s290 = smul.addr %s287, 2
      %s291 = sadd.s32 %s289, %s290
      %s292 = scalar_lea.vmem %s7, %s291
      %p293 = scmp.lt.s32.totalorder %s22, 1
      %s294 = scalar_select %p293, %s22, 1
      %p295 = scmp.lt.s32.totalorder %s23, 1
      %s296 = scalar_select %p295, %s23, 1
      %s297 = smul.addr %s294, 2
      %s298 = sadd.s32 %s296, %s297
      %s299 = smul.addr %s298, 4
      %s300 = scalar_lea.vmem %s0, %s299
      %p301 = scmp.lt.s32.totalorder %s22, 1
      %s302 = scalar_select %p301, %s22, 1
      %p303 = scmp.lt.s32.totalorder %s23, 1
      %s304 = scalar_select %p303, %s23, 1
      %s305 = smul.addr %s302, 2
      %s306 = sadd.s32 %s304, %s305
      %s307 = scalar_lea.vmem %s7, %s306
      %v309 = vld [vmem:[%s300] sm:$0x7]
      %v310 = vpack.c.bf16 %v309, %v309
      %v311 = vld [vmem:[%s1] sm:$0xf]
      %v312 = vld [vmem:[%s1 + $0x4] sm:$0xf]
      %v313 = vld [vmem:[%s1 + $0x8] sm:$0xf]
      %v314 = vld [vmem:[%s1 + $0xc] sm:$0xf]
      %v315 = vld [vmem:[%s1 + $0x10] sm:$0xf]
      %v316 = vld [vmem:[%s1 + $0x14] sm:$0xf]
      %v317 = vld [vmem:[%s1 + $0x18] sm:$0xf]
      %v318 = vld [vmem:[%s1 + $0x1c] sm:$0xf]
      %v319 = vld [vmem:[%s2] sm:$0xff]
      %v320 = vld [vmem:[%s2 + $0x8] sm:$0xff]
      %v321 = vld [vmem:[%s2 + $0x10] sm:$0xff]
      %v322 = vld [vmem:[%s2 + $0x18] sm:$0xff]
      %v323 = vld [vmem:[%s2 + $0x20] sm:$0xff]
      %v324 = vld [vmem:[%s2 + $0x28] sm:$0xff]
      %v325 = vld [vmem:[%s2 + $0x30] sm:$0xff]
      %v326 = vld [vmem:[%s2 + $0x38] sm:$0xff]
      %328 = vset.pattern.permute.xlu0 0
      %329 = vperm.xlu0 %328, %v319
      %v330 = vpop.permute.xlu0 %329
      %333 = vset.pattern.permute.xlu0 0
      %334 = vperm.xlu0 %333, %v320
      %v335 = vpop.permute.xlu0 %334
      %338 = vset.pattern.permute.xlu0 0
      %339 = vperm.xlu0 %338, %v321
      %v340 = vpop.permute.xlu0 %339
      %343 = vset.pattern.permute.xlu0 0
      %344 = vperm.xlu0 %343, %v322
      %v345 = vpop.permute.xlu0 %344
      %348 = vset.pattern.permute.xlu0 0
      %349 = vperm.xlu0 %348, %v323
      %v350 = vpop.permute.xlu0 %349
      %353 = vset.pattern.permute.xlu0 0
      %354 = vperm.xlu0 %353, %v324
      %v355 = vpop.permute.xlu0 %354
      %358 = vset.pattern.permute.xlu0 0
      %359 = vperm.xlu0 %358, %v325
      %v360 = vpop.permute.xlu0 %359
      %363 = vset.pattern.permute.xlu0 0
      %364 = vperm.xlu0 %363, %v326
      %v365 = vpop.permute.xlu0 %364
      %v375 = vunpack.c.l.b16 %v311
      %v376 = vunpack.c.l.b16 %v312
      %v377 = vunpack.c.l.b16 %v313
      %v378 = vunpack.c.l.b16 %v314
      %v379 = vunpack.c.l.b16 %v315
      %v380 = vunpack.c.l.b16 %v316
      %v381 = vunpack.c.l.b16 %v317
      %v382 = vunpack.c.l.b16 %v318
      %v383 = vpack.c.b16 %v376, %v375
      %v384 = vpack.c.b16 %v378, %v377
      %v385 = vpack.c.b16 %v380, %v379
      %v386 = vpack.c.b16 %v382, %v381
      %vm387 = vcmask 23552
      %v389 = vsel %vm387, %v383, 0
      %v392 = vsel %vm387, %v384, 0
      %v395 = vsel %vm387, %v385, 0
      %v398 = vsel %vm387, %v386, 0
      %vm400 = vcmask 1040384
      %vm401 = vcmask 1041408
      %v402 = vsel %vm400, 4294967295, 65535
      %v403 = vsel %vm401, %v402, 0
      %v405 = vand.u32 %v310, %v403
      %407 = vmatpush.bf16.msra.mxu0 0
      %408 = vmatpush.bf16.msra.mxu0 0
      %409 = vmatpush.bf16.msra.mxu0 0
      %410 = vmatpush.bf16.msra.mxu0 0
      %411 = vmatpush.bf16.msra.mxu0 0
      %412 = vmatpush.bf16.msra.mxu0 0
      %413 = vmatpush.bf16.msra.mxu0 0
      %414 = vmatpush.bf16.msra.mxu0 %v405
      %415 = vmatmul.bf16.gmra.mxu0 %v389
      %v416 = vpop.f32.mrf.mxu0
      %v417 = vadd.f32 %v330, %v416
      %v418 = vpop.f32.mrf.mxu0
      %v419 = vadd.f32 %v335, %v418
      %420 = vmatmul.bf16.gmra.mxu0 %v392
      %v421 = vpop.f32.mrf.mxu0
      %v422 = vadd.f32 %v340, %v421
      %v423 = vpop.f32.mrf.mxu0
      %v424 = vadd.f32 %v345, %v423
      %425 = vmatmul.bf16.gmra.mxu0 %v395
      %v426 = vpop.f32.mrf.mxu0
      %v427 = vadd.f32 %v350, %v426
      %v428 = vpop.f32.mrf.mxu0
      %v429 = vadd.f32 %v355, %v428
      %430 = vmatmul.bf16.gmra.mxu0 %v398
      %v431 = vpop.f32.mrf.mxu0
      %v432 = vadd.f32 %v360, %v431
      %v433 = vpop.f32.mrf.mxu0
      %v434 = vadd.f32 %v365, %v433
      %435 = vdwg.mxu0
      %vm436 = vcmp.ge.f32.partialorder %v417, 0.0
      %vm437 = vcmp.ge.f32.partialorder %v419, 0.0
      %vm438 = vcmp.ge.f32.partialorder %v422, 0.0
      %vm439 = vcmp.ge.f32.partialorder %v424, 0.0
      %vm440 = vcmp.ge.f32.partialorder %v427, 0.0
      %vm441 = vcmp.ge.f32.partialorder %v429, 0.0
      %vm442 = vcmp.ge.f32.partialorder %v432, 0.0
      %vm443 = vcmp.ge.f32.partialorder %v434, 0.0
      %v444 = vmul.f32 %v417, 0.2
      %v445 = vmul.f32 %v419, 0.2
      %v446 = vmul.f32 %v422, 0.2
      %v447 = vmul.f32 %v424, 0.2
      %v448 = vmul.f32 %v427, 0.2
      %v449 = vmul.f32 %v429, 0.2
      %v450 = vmul.f32 %v432, 0.2
      %v451 = vmul.f32 %v434, 0.2
      %v452 = vsel %vm436, %v417, %v444
      %v453 = vsel %vm437, %v419, %v445
      %v454 = vsel %vm438, %v422, %v446
      %v455 = vsel %vm439, %v424, %v447
      %v456 = vsel %vm440, %v427, %v448
      %v457 = vsel %vm441, %v429, %v449
      %v458 = vsel %vm442, %v432, %v450
      %v459 = vsel %vm443, %v434, %v451
      %v460 = vpack.c.bf16 %v453, %v452
      %v461 = vpack.c.bf16 %v455, %v454
      %v462 = vpack.c.bf16 %v457, %v456
      %v463 = vpack.c.bf16 %v459, %v458
      %v464 = vld [vmem:[%s3] sm:$0xf]
      %v465 = vld [vmem:[%s3 + $0x4] sm:$0xf]
      %v466 = vld [vmem:[%s3 + $0x8] sm:$0xf]
      %v467 = vld [vmem:[%s3 + $0xc] sm:$0xf]
      %v468 = vld [vmem:[%s3 + $0x10] sm:$0xf]
      %v469 = vld [vmem:[%s3 + $0x14] sm:$0xf]
      %v470 = vld [vmem:[%s3 + $0x18] sm:$0xf]
      %v471 = vld [vmem:[%s3 + $0x1c] sm:$0xf]
      %v472 = vld [vmem:[%s3 + $0x20] sm:$0xf]
      %v473 = vld [vmem:[%s3 + $0x24] sm:$0xf]
      %v474 = vld [vmem:[%s3 + $0x28] sm:$0xf]
      %v475 = vld [vmem:[%s3 + $0x2c] sm:$0xf]
      %v476 = vld [vmem:[%s3 + $0x30] sm:$0xf]
      %v477 = vld [vmem:[%s3 + $0x34] sm:$0xf]
      %v478 = vld [vmem:[%s3 + $0x38] sm:$0xf]
      %v479 = vld [vmem:[%s3 + $0x3c] sm:$0xf]
      %v496 = vunpack.c.l.b16 %v464
      %v497 = vunpack.c.l.b16 %v465
      %v498 = vunpack.c.l.b16 %v466
      %v499 = vunpack.c.l.b16 %v467
      %v500 = vunpack.c.l.b16 %v468
      %v501 = vunpack.c.l.b16 %v469
      %v502 = vunpack.c.l.b16 %v470
      %v503 = vunpack.c.l.b16 %v471
      %v504 = vunpack.c.l.b16 %v472
      %v505 = vunpack.c.l.b16 %v473
      %v506 = vunpack.c.l.b16 %v474
      %v507 = vunpack.c.l.b16 %v475
      %v508 = vunpack.c.l.b16 %v476
      %v509 = vunpack.c.l.b16 %v477
      %v510 = vunpack.c.l.b16 %v478
      %v511 = vunpack.c.l.b16 %v479
      %v512 = vpack.c.b16 %v497, %v496
      %v513 = vpack.c.b16 %v499, %v498
      %v514 = vpack.c.b16 %v501, %v500
      %v515 = vpack.c.b16 %v503, %v502
      %v516 = vpack.c.b16 %v505, %v504
      %v517 = vpack.c.b16 %v507, %v506
      %v518 = vpack.c.b16 %v509, %v508
      %v519 = vpack.c.b16 %v511, %v510
      %vm520 = vcmask 523264
      %v522 = vsel %vm520, %v512, 0
      %v525 = vsel %vm520, %v513, 0
      %v528 = vsel %vm520, %v514, 0
      %v531 = vsel %vm520, %v515, 0
      %v534 = vsel %vm520, %v516, 0
      %v537 = vsel %vm520, %v517, 0
      %v540 = vsel %vm520, %v518, 0
      %v543 = vsel %vm520, %v519, 0
      %545 = vmatpush.bf16.msra.mxu0 0
      %546 = vmatpush.bf16.msra.mxu0 0
      %547 = vmatpush.bf16.msra.mxu0 0
      %548 = vmatpush.bf16.msra.mxu0 0
      %549 = vmatpush.bf16.msra.mxu0 %v463
      %550 = vmatpush.bf16.msra.mxu0 %v462
      %551 = vmatpush.bf16.msra.mxu0 %v461
      %552 = vmatpush.bf16.msra.mxu0 %v460
      %553 = vmatmul.bf16.gmra.mxu0 %v522
      %v554 = vpop.f32.mrf.mxu0
      %v555 = vadd.f32 0.0, %v554
      %v556 = vpop.f32.mrf.mxu0
      %v557 = vadd.f32 0.0, %v556
      %558 = vmatmul.bf16.gmra.mxu0 %v525
      %v559 = vpop.f32.mrf.mxu0
      %v560 = vadd.f32 0.0, %v559
      %v561 = vpop.f32.mrf.mxu0
      %v562 = vadd.f32 0.0, %v561
      %563 = vmatmul.bf16.gmra.mxu0 %v528
      %v564 = vpop.f32.mrf.mxu0
      %v565 = vadd.f32 0.0, %v564
      %v566 = vpop.f32.mrf.mxu0
      %v567 = vadd.f32 0.0, %v566
      %568 = vmatmul.bf16.gmra.mxu0 %v531
      %v569 = vpop.f32.mrf.mxu0
      %v570 = vadd.f32 0.0, %v569
      %v571 = vpop.f32.mrf.mxu0
      %v572 = vadd.f32 0.0, %v571
      %573 = vmatmul.bf16.gmra.mxu0 %v534
      %v574 = vpop.f32.mrf.mxu0
      %v575 = vadd.f32 0.0, %v574
      %v576 = vpop.f32.mrf.mxu0
      %v577 = vadd.f32 0.0, %v576
      %578 = vmatmul.bf16.gmra.mxu0 %v537
      %v579 = vpop.f32.mrf.mxu0
      %v580 = vadd.f32 0.0, %v579
      %v581 = vpop.f32.mrf.mxu0
      %v582 = vadd.f32 0.0, %v581
      %583 = vmatmul.bf16.gmra.mxu0 %v540
      %v584 = vpop.f32.mrf.mxu0
      %v585 = vadd.f32 0.0, %v584
      %v586 = vpop.f32.mrf.mxu0
      %v587 = vadd.f32 0.0, %v586
      %588 = vmatmul.bf16.gmra.mxu0 %v543
      %v589 = vpop.f32.mrf.mxu0
      %v590 = vadd.f32 0.0, %v589
      %v591 = vpop.f32.mrf.mxu0
      %v592 = vadd.f32 0.0, %v591
      %593 = vdwg.mxu0
      %v594 = vld [vmem:[%s4] sm:$0xff]
      %v595 = vld [vmem:[%s4 + $0x8] sm:$0xff]
      %v596 = vld [vmem:[%s4 + $0x10] sm:$0xff]
      %v597 = vld [vmem:[%s4 + $0x18] sm:$0xff]
      %v598 = vld [vmem:[%s4 + $0x20] sm:$0xff]
      %v599 = vld [vmem:[%s4 + $0x28] sm:$0xff]
      %v600 = vld [vmem:[%s4 + $0x30] sm:$0xff]
      %v601 = vld [vmem:[%s4 + $0x38] sm:$0xff]
      %v602 = vld [vmem:[%s4 + $0x40] sm:$0xff]
      %v603 = vld [vmem:[%s4 + $0x48] sm:$0xff]
      %v604 = vld [vmem:[%s4 + $0x50] sm:$0xff]
      %v605 = vld [vmem:[%s4 + $0x58] sm:$0xff]
      %v606 = vld [vmem:[%s4 + $0x60] sm:$0xff]
      %v607 = vld [vmem:[%s4 + $0x68] sm:$0xff]
      %v608 = vld [vmem:[%s4 + $0x70] sm:$0xff]
      %v609 = vld [vmem:[%s4 + $0x78] sm:$0xff]
      %611 = vset.pattern.permute.xlu0 0
      %612 = vperm.xlu0 %611, %v594
      %v613 = vpop.permute.xlu0 %612
      %616 = vset.pattern.permute.xlu0 0
      %617 = vperm.xlu0 %616, %v595
      %v618 = vpop.permute.xlu0 %617
      %621 = vset.pattern.permute.xlu0 0
      %622 = vperm.xlu0 %621, %v596
      %v623 = vpop.permute.xlu0 %622
      %626 = vset.pattern.permute.xlu0 0
      %627 = vperm.xlu0 %626, %v597
      %v628 = vpop.permute.xlu0 %627
      %631 = vset.pattern.permute.xlu0 0
      %632 = vperm.xlu0 %631, %v598
      %v633 = vpop.permute.xlu0 %632
      %636 = vset.pattern.permute.xlu0 0
      %637 = vperm.xlu0 %636, %v599
      %v638 = vpop.permute.xlu0 %637
      %641 = vset.pattern.permute.xlu0 0
      %642 = vperm.xlu0 %641, %v600
      %v643 = vpop.permute.xlu0 %642
      %646 = vset.pattern.permute.xlu0 0
      %647 = vperm.xlu0 %646, %v601
      %v648 = vpop.permute.xlu0 %647
      %651 = vset.pattern.permute.xlu0 0
      %652 = vperm.xlu0 %651, %v602
      %v653 = vpop.permute.xlu0 %652
      %656 = vset.pattern.permute.xlu0 0
      %657 = vperm.xlu0 %656, %v603
      %v658 = vpop.permute.xlu0 %657
      %661 = vset.pattern.permute.xlu0 0
      %662 = vperm.xlu0 %661, %v604
      %v663 = vpop.permute.xlu0 %662
      %666 = vset.pattern.permute.xlu0 0
      %667 = vperm.xlu0 %666, %v605
      %v668 = vpop.permute.xlu0 %667
      %671 = vset.pattern.permute.xlu0 0
      %672 = vperm.xlu0 %671, %v606
      %v673 = vpop.permute.xlu0 %672
      %676 = vset.pattern.permute.xlu0 0
      %677 = vperm.xlu0 %676, %v607
      %v678 = vpop.permute.xlu0 %677
      %681 = vset.pattern.permute.xlu0 0
      %682 = vperm.xlu0 %681, %v608
      %v683 = vpop.permute.xlu0 %682
      %686 = vset.pattern.permute.xlu0 0
      %687 = vperm.xlu0 %686, %v609
      %v688 = vpop.permute.xlu0 %687
      %v690 = vmul.f32 %v555, %v613
      %v691 = vmul.f32 %v557, %v618
      %v692 = vmul.f32 %v560, %v623
      %v693 = vmul.f32 %v562, %v628
      %v694 = vmul.f32 %v565, %v633
      %v695 = vmul.f32 %v567, %v638
      %v696 = vmul.f32 %v570, %v643
      %v697 = vmul.f32 %v572, %v648
      %v698 = vmul.f32 %v575, %v653
      %v699 = vmul.f32 %v577, %v658
      %v700 = vmul.f32 %v580, %v663
      %v701 = vmul.f32 %v582, %v668
      %v702 = vmul.f32 %v585, %v673
      %v703 = vmul.f32 %v587, %v678
      %v704 = vmul.f32 %v590, %v683
      %v705 = vmul.f32 %v592, %v688
      %v706 = vld [vmem:[%s5] sm:$0xff]
      %v707 = vld [vmem:[%s5 + $0x8] sm:$0xff]
      %v708 = vld [vmem:[%s5 + $0x10] sm:$0xff]
      %v709 = vld [vmem:[%s5 + $0x18] sm:$0xff]
      %v710 = vld [vmem:[%s5 + $0x20] sm:$0xff]
      %v711 = vld [vmem:[%s5 + $0x28] sm:$0xff]
      %v712 = vld [vmem:[%s5 + $0x30] sm:$0xff]
      %v713 = vld [vmem:[%s5 + $0x38] sm:$0xff]
      %v714 = vld [vmem:[%s5 + $0x40] sm:$0xff]
      %v715 = vld [vmem:[%s5 + $0x48] sm:$0xff]
      %v716 = vld [vmem:[%s5 + $0x50] sm:$0xff]
      %v717 = vld [vmem:[%s5 + $0x58] sm:$0xff]
      %v718 = vld [vmem:[%s5 + $0x60] sm:$0xff]
      %v719 = vld [vmem:[%s5 + $0x68] sm:$0xff]
      %v720 = vld [vmem:[%s5 + $0x70] sm:$0xff]
      %v721 = vld [vmem:[%s5 + $0x78] sm:$0xff]
      %723 = vset.pattern.permute.xlu0 0
      %724 = vperm.xlu0 %723, %v706
      %v725 = vpop.permute.xlu0 %724
      %728 = vset.pattern.permute.xlu0 0
      %729 = vperm.xlu0 %728, %v707
      %v730 = vpop.permute.xlu0 %729
      %733 = vset.pattern.permute.xlu0 0
      %734 = vperm.xlu0 %733, %v708
      %v735 = vpop.permute.xlu0 %734
      %738 = vset.pattern.permute.xlu0 0
      %739 = vperm.xlu0 %738, %v709
      %v740 = vpop.permute.xlu0 %739
      %743 = vset.pattern.permute.xlu0 0
      %744 = vperm.xlu0 %743, %v710
      %v745 = vpop.permute.xlu0 %744
      %748 = vset.pattern.permute.xlu0 0
      %749 = vperm.xlu0 %748, %v711
      %v750 = vpop.permute.xlu0 %749
      %753 = vset.pattern.permute.xlu0 0
      %754 = vperm.xlu0 %753, %v712
      %v755 = vpop.permute.xlu0 %754
      %758 = vset.pattern.permute.xlu0 0
      %759 = vperm.xlu0 %758, %v713
      %v760 = vpop.permute.xlu0 %759
      %763 = vset.pattern.permute.xlu0 0
      %764 = vperm.xlu0 %763, %v714
      %v765 = vpop.permute.xlu0 %764
      %768 = vset.pattern.permute.xlu0 0
      %769 = vperm.xlu0 %768, %v715
      %v770 = vpop.permute.xlu0 %769
      %773 = vset.pattern.permute.xlu0 0
      %774 = vperm.xlu0 %773, %v716
      %v775 = vpop.permute.xlu0 %774
      %778 = vset.pattern.permute.xlu0 0
      %779 = vperm.xlu0 %778, %v717
      %v780 = vpop.permute.xlu0 %779
      %783 = vset.pattern.permute.xlu0 0
      %784 = vperm.xlu0 %783, %v718
      %v785 = vpop.permute.xlu0 %784
      %788 = vset.pattern.permute.xlu0 0
      %789 = vperm.xlu0 %788, %v719
      %v790 = vpop.permute.xlu0 %789
      %793 = vset.pattern.permute.xlu0 0
      %794 = vperm.xlu0 %793, %v720
      %v795 = vpop.permute.xlu0 %794
      %798 = vset.pattern.permute.xlu0 0
      %799 = vperm.xlu0 %798, %v721
      %v800 = vpop.permute.xlu0 %799
      %v802 = vadd.f32 %v690, %v725
      %v803 = vadd.f32 %v691, %v730
      %v804 = vadd.f32 %v692, %v735
      %v805 = vadd.f32 %v693, %v740
      %v806 = vadd.f32 %v694, %v745
      %v807 = vadd.f32 %v695, %v750
      %v808 = vadd.f32 %v696, %v755
      %v809 = vadd.f32 %v697, %v760
      %v810 = vadd.f32 %v698, %v765
      %v811 = vadd.f32 %v699, %v770
      %v812 = vadd.f32 %v700, %v775
      %v813 = vadd.f32 %v701, %v780
      %v814 = vadd.f32 %v702, %v785
      %v815 = vadd.f32 %v703, %v790
      %v816 = vadd.f32 %v704, %v795
      %v817 = vadd.f32 %v705, %v800
      %vm818 = vcmp.ge.f32.partialorder %v802, 0.0
      %vm819 = vcmp.ge.f32.partialorder %v803, 0.0
      %vm820 = vcmp.ge.f32.partialorder %v804, 0.0
      %vm821 = vcmp.ge.f32.partialorder %v805, 0.0
      %vm822 = vcmp.ge.f32.partialorder %v806, 0.0
      %vm823 = vcmp.ge.f32.partialorder %v807, 0.0
      %vm824 = vcmp.ge.f32.partialorder %v808, 0.0
      %vm825 = vcmp.ge.f32.partialorder %v809, 0.0
      %vm826 = vcmp.ge.f32.partialorder %v810, 0.0
      %vm827 = vcmp.ge.f32.partialorder %v811, 0.0
      %vm828 = vcmp.ge.f32.partialorder %v812, 0.0
      %vm829 = vcmp.ge.f32.partialorder %v813, 0.0
      %vm830 = vcmp.ge.f32.partialorder %v814, 0.0
      %vm831 = vcmp.ge.f32.partialorder %v815, 0.0
      %vm832 = vcmp.ge.f32.partialorder %v816, 0.0
      %vm833 = vcmp.ge.f32.partialorder %v817, 0.0
      %v834 = vmul.f32 %v802, 0.2
      %v835 = vmul.f32 %v803, 0.2
      %v836 = vmul.f32 %v804, 0.2
      %v837 = vmul.f32 %v805, 0.2
      %v838 = vmul.f32 %v806, 0.2
      %v839 = vmul.f32 %v807, 0.2
      %v840 = vmul.f32 %v808, 0.2
      %v841 = vmul.f32 %v809, 0.2
      %v842 = vmul.f32 %v810, 0.2
      %v843 = vmul.f32 %v811, 0.2
      %v844 = vmul.f32 %v812, 0.2
      %v845 = vmul.f32 %v813, 0.2
      %v846 = vmul.f32 %v814, 0.2
      %v847 = vmul.f32 %v815, 0.2
      %v848 = vmul.f32 %v816, 0.2
      %v849 = vmul.f32 %v817, 0.2
      %v850 = vsel %vm818, %v802, %v834
      %v851 = vsel %vm819, %v803, %v835
      %v852 = vsel %vm820, %v804, %v836
      %v853 = vsel %vm821, %v805, %v837
      %v854 = vsel %vm822, %v806, %v838
      %v855 = vsel %vm823, %v807, %v839
      %v856 = vsel %vm824, %v808, %v840
      %v857 = vsel %vm825, %v809, %v841
      %v858 = vsel %vm826, %v810, %v842
      %v859 = vsel %vm827, %v811, %v843
      %v860 = vsel %vm828, %v812, %v844
      %v861 = vsel %vm829, %v813, %v845
      %v862 = vsel %vm830, %v814, %v846
      %v863 = vsel %vm831, %v815, %v847
      %v864 = vsel %vm832, %v816, %v848
      %v865 = vsel %vm833, %v817, %v849
      %v866 = vpack.c.bf16 %v851, %v850
      %v867 = vpack.c.bf16 %v853, %v852
      %v868 = vpack.c.bf16 %v855, %v854
      %v869 = vpack.c.bf16 %v857, %v856
      %v870 = vpack.c.bf16 %v859, %v858
      %v871 = vpack.c.bf16 %v861, %v860
      %v872 = vpack.c.bf16 %v863, %v862
      %v873 = vpack.c.bf16 %v865, %v864
      %v874 = vld [vmem:[%s6] sm:$0x1]
      %875 = vmatpush.bf16.msra.mxu0 %v873
      %876 = vmatpush.bf16.msra.mxu0 %v872
      %877 = vmatpush.bf16.msra.mxu0 %v871
      %878 = vmatpush.bf16.msra.mxu0 %v870
      %879 = vmatpush.bf16.msra.mxu0 %v869
      %880 = vmatpush.bf16.msra.mxu0 %v868
      %881 = vmatpush.bf16.msra.mxu0 %v867
      %882 = vmatpush.bf16.msra.mxu0 %v866
      %883 = vmatmul.bf16.gmra.mxu0 %v874
      %v884 = vpop.f32.mrf.mxu0
      %v885 = vadd.f32 0.0, %v884
      %v886 = vpop.f32.mrf.mxu0
      %887 = vdwg.mxu0
      %888 = vst [vmem:[%s307] sm:$0x1] %v885
      %p889 = scmp.lt.s32.totalorder %s22, 1
      %s890 = scalar_select %p889, %s22, 1
      %p891 = scmp.lt.s32.totalorder %s23, 1
      %s892 = scalar_select %p891, %s23, 1
      %s893 = smul.addr %s890, 2
      %s894 = sadd.s32 %s892, %s893
      %s895 = scalar_lea.vmem %s7, %s894
      // Predicated region
      $region49: #{pixel_discriminator_forward.1} parent=47 // pred_check
        %p896 = pneg %p204
      $region50: #{pixel_discriminator_forward.1} parent=47 // pred_check_branch
        %898 = sbr.rel (%p896) target = $region52
      $region51: #{pixel_discriminator_forward.1} parent=47 // pred_region
        _
      $region52: #{pixel_discriminator_forward.1} parent=47 // pred_fallthru
        _
    $region48: #{pixel_discriminator_forward.1} parent=5 // pred_fallthru
      _
    %p899 = scmp.le.s32.totalorder 2, %s13
    // Predicated region
    $region53: #{pixel_discriminator_forward.1} parent=5 // pred_check
      %p900 = pneg %p899
    $region54: #{pixel_discriminator_forward.1} parent=5 // pred_check_branch
      %902 = sbr.rel (%p900) target = $region56
    $region55: #{pixel_discriminator_forward.1} parent=5 // pred_region
      %s903 = ssub.s32 %s13, 2
      // Predicated region
      $region57: #{pixel_discriminator_forward.1} parent=55 // pred_check
        %p904 = pneg %p210
      $region58: #{pixel_discriminator_forward.1} parent=55 // pred_check_branch
        %906 = sbr.rel (%p904) target = $region60
      $region59: #{pixel_discriminator_forward.1} parent=55 // pred_region
        %p907 = scmp.lt.s32.totalorder %s24, 1
        %s908 = scalar_select %p907, %s24, 1
        %p909 = scmp.lt.s32.totalorder %s25, 1
        %s910 = scalar_select %p909, %s25, 1
        %s911 = smul.addr %s908, 2
        %s912 = sadd.s32 %s910, %s911
        %s913 = scalar_lea.vmem %s7, %s912
      $region60: #{pixel_discriminator_forward.1} parent=55 // pred_fallthru
        _
    $region56: #{pixel_discriminator_forward.1} parent=5 // pred_fallthru
      _
  $region6: #{pixel_discriminator_forward.1} parent=0 // loop_footer
    %s17 = sadd.s32 1, %s13
  $region7: #{pixel_discriminator_forward.1} parent=0 // loop_footer_branch
    %12 = sbr.rel target = $region3
  $region8: #{pixel_discriminator_forward.1} parent=0 // loop_exit
    _

</llo_original>
